<compile_context>
chip_gen: v7x
topology: tpu7x:2x2x1
jax: 0.10.0
libtpu: 0.0.40
codegen_flags: <defaults>
</compile_context>

<pallas_src>
import functools

import jax
import jax.numpy as jnp
from jax.experimental import pallas as pl
from jax.experimental.pallas import tpu as pltpu

SMOOTH = 1.0
LANES = 128


def dice_partial_kernel(p_ref, t_ref, o_ref, *, tr):
    """Accumulate per-core partial sums.

    o_ref block is (2, 8, 128):
      o_ref[0] accumulates sum(p * t)   (intersection)
      o_ref[1] accumulates sum(p + t)   (|p| + |t|)
    The block index is constant along the inner (reduction) axis, so the
    block stays resident in VMEM and acts as the accumulator.
    """
    i = pl.program_id(1)

    @pl.when(i == 0)
    def _():
        o_ref[...] = jnp.zeros_like(o_ref)

    p = p_ref[...]  # (tr, 128) f32
    t = t_ref[...]

    sub = tr // 8
    # Leading-axis reduction of a (sub, 8, 128) view: pure VPU vector adds,
    # no cross-lane (XLU) work inside the grid loop.
    inter = jnp.sum((p * t).reshape(sub, 8, LANES), axis=0)
    total = jnp.sum((p + t).reshape(sub, 8, LANES), axis=0)

    o_ref[0] += inter
    o_ref[1] += total


def dice_loss(y_pred, y_true, *, tr=512, smooth=SMOOTH):
    """Pallas implementation of DiceLoss().forward(y_pred, y_true)."""
    assert y_pred.shape == y_true.shape
    n = int(y_pred.size)

    # TotalFlatten + .float()
    p = jnp.reshape(y_pred, (-1,)).astype(jnp.float32)
    t = jnp.reshape(y_true, (-1,)).astype(jnp.float32)

    # Shrink the row tile for small inputs so we never over-pad; keep it a
    # multiple of 8 sublanes.
    rows_needed = pl.cdiv(n, LANES)
    tr = min(tr, max(8, ((rows_needed + 7) // 8) * 8))
    block = tr * LANES

    # Split rows across a leading "parallel" grid axis when there is enough
    # work (lets v7x use both TensorCores; harmless elsewhere).
    nsplit = 2 if n >= 2 * block else 1

    # Pad (zeros are exact for Dice: they add 0 to every sum) only if needed.
    n_pad = pl.cdiv(n, nsplit * block) * (nsplit * block)
    if n_pad != n:
        p = jnp.pad(p, (0, n_pad - n))
        t = jnp.pad(t, (0, n_pad - n))

    rows = n_pad // LANES
    p2 = p.reshape(rows, LANES)
    t2 = t.reshape(rows, LANES)

    steps = rows // (nsplit * tr)

    in_map = lambda s, i: (s * steps + i, 0)

    partials = pl.pallas_call(
        functools.partial(dice_partial_kernel, tr=tr),
        out_shape=jax.ShapeDtypeStruct((2 * nsplit, 8, LANES), jnp.float32),
        grid_spec=pltpu.PrefetchScalarGridSpec(
            num_scalar_prefetch=0,
            grid=(nsplit, steps),
            in_specs=[
                pl.BlockSpec((tr, LANES), in_map),
                pl.BlockSpec((tr, LANES), in_map),
            ],
            out_specs=pl.BlockSpec((2, 8, LANES), lambda s, i: (s, 0, 0)),
        ),
        compiler_params=pltpu.CompilerParams(
            dimension_semantics=("parallel", "arbitrary"),
            vmem_limit_bytes=32 * 1024 * 1024,
        ),
        cost_estimate=pl.CostEstimate(
            flops=4 * n_pad,
            transcendentals=0,
            bytes_accessed=2 * 4 * n_pad + 2 * nsplit * 2 * 8 * LANES * 4,
        ),
    )(p2, t2)

    # Final (tiny) cross-lane reduction + scalar combine outside the kernel.
    partials = partials.reshape(nsplit, 2, 8, LANES)
    intersection = jnp.sum(partials[:, 0])
    total = jnp.sum(partials[:, 1])
    dsc = (2.0 * intersection + smooth) / (total + smooth)
    return 1.0 - dsc


def dice_loss_ref(y_pred, y_true, smooth=SMOOTH):
    p = jnp.reshape(y_pred, (-1,)).astype(jnp.float32)
    t = jnp.reshape(y_true, (-1,)).astype(jnp.float32)
    intersection = jnp.sum(p * t)
    dsc = (2.0 * intersection + smooth) / (jnp.sum(p) + jnp.sum(t) + smooth)
    return 1.0 - dsc


if __name__ == "__main__":
    key = jax.random.PRNGKey(0)

    # NCHW feature maps, as the PyTorch module expects.  Also exercise a
    # ragged (padding) shape and a shape large enough to use the 2-way split.
    shapes = [(2, 4, 16, 16), (2, 3, 37, 53), (2, 4, 128, 128)]

    for shape in shapes:
        key, k1, k2 = jax.random.split(key, 3)
        y_pred = jax.random.uniform(k1, shape, dtype=jnp.float32)       # probs
        y_true = jax.random.bernoulli(k2, 0.5, shape).astype(jnp.float32)

        out = dice_loss(y_pred, y_true)
        out = jax.block_until_ready(out)

        ref = dice_loss_ref(y_pred, y_true)
        assert jnp.allclose(out, ref, rtol=1e-5, atol=1e-6), (shape, out, ref)

    print("KERNEL_OK")
</pallas_src>

<mosaic_0001>
module attributes {stable_mosaic.version = 11 : i64} {
  func.func @dice_partial_kernel(%arg0: i32, %arg1: i32, %arg2: memref<16x128xf32, #tpu.memory_space<vmem>>, %arg3: memref<16x128xf32, #tpu.memory_space<vmem>>, %arg4: memref<2x8x128xf32, #tpu.memory_space<vmem>>) attributes {dimension_semantics = [#tpu.dimension_semantics<parallel>, #tpu.dimension_semantics<arbitrary>], iteration_bounds = array<i64: 1, 1>, scalar_prefetch = 0 : i64, scratch_operands = 0 : i64, tpu.core_type = #tpu.core_type<tc>, window_params = [{transform_indices = @transform_0, window_bounds = array<i64: 16, 128>}, {transform_indices = @transform_1, window_bounds = array<i64: 16, 128>}, {transform_indices = @transform_2, window_bounds = array<i64: 2, 8, 128>}]} {
    %c0_i32 = arith.constant 0 : i32
    %0 = arith.cmpi eq, %arg1, %c0_i32 : i32
    %1 = arith.extui %0 : i1 to i32
    %c0_i32_0 = arith.constant 0 : i32
    %2 = arith.cmpi ne, %1, %c0_i32_0 : i32
    scf.if %2 {
      %cst_16 = arith.constant 0.000000e+00 : f32
      %23 = vector.broadcast %cst_16 : f32 to vector<2x8x128xf32>
      %c0_17 = arith.constant 0 : index
      %c0_18 = arith.constant 0 : index
      %c0_19 = arith.constant 0 : index
      %24 = vector.load %arg4[%c0_17, %c0_18, %c0_19] : memref<2x8x128xf32, #tpu.memory_space<vmem>>, vector<2x8x128xf32>
      tpu.vector_store %arg4[%c0_17, %c0_18, %c0_19], %23 {strides = array<i32>} : memref<2x8x128xf32, #tpu.memory_space<vmem>>, vector<2x8x128xf32>,
    } else {
    }
    %c0 = arith.constant 0 : index
    %c0_1 = arith.constant 0 : index
    %3 = vector.load %arg2[%c0, %c0_1] : memref<16x128xf32, #tpu.memory_space<vmem>>, vector<16x128xf32>
    %c0_2 = arith.constant 0 : index
    %c0_3 = arith.constant 0 : index
    %4 = vector.load %arg3[%c0_2, %c0_3] : memref<16x128xf32, #tpu.memory_space<vmem>>, vector<16x128xf32>
    %5 = arith.mulf %3, %4 : vector<16x128xf32>
    %6 = vector.shape_cast %5 : vector<16x128xf32> to vector<2x8x128xf32>
    %cst = arith.constant dense<0.000000e+00> : vector<8x128xf32>
    %7 = vector.multi_reduction <add>, %6, %cst [0] : vector<2x8x128xf32> to vector<8x128xf32>
    %8 = arith.addf %3, %4 : vector<16x128xf32>
    %9 = vector.shape_cast %8 : vector<16x128xf32> to vector<2x8x128xf32>
    %cst_4 = arith.constant dense<0.000000e+00> : vector<8x128xf32>
    %10 = vector.multi_reduction <add>, %9, %cst_4 [0] : vector<2x8x128xf32> to vector<8x128xf32>
    %c0_5 = arith.constant 0 : index
    %c0_6 = arith.constant 0 : index
    %c0_7 = arith.constant 0 : index
    %11 = vector.load %arg4[%c0_5, %c0_6, %c0_7] : memref<2x8x128xf32, #tpu.memory_space<vmem>>, vector<1x8x128xf32>
    %12 = vector.shape_cast %11 : vector<1x8x128xf32> to vector<8x128xf32>
    %13 = arith.addf %12, %7 : vector<8x128xf32>
    %c0_8 = arith.constant 0 : index
    %c0_9 = arith.constant 0 : index
    %c0_10 = arith.constant 0 : index
    %14 = vector.load %arg4[%c0_8, %c0_9, %c0_10] : memref<2x8x128xf32, #tpu.memory_space<vmem>>, vector<1x8x128xf32>
    %15 = vector.shape_cast %14 : vector<1x8x128xf32> to vector<8x128xf32>
    %16 = vector.shape_cast %13 : vector<8x128xf32> to vector<1x8x128xf32>
    tpu.vector_store %arg4[%c0_8, %c0_9, %c0_10], %16 {strides = array<i32>} : memref<2x8x128xf32, #tpu.memory_space<vmem>>, vector<1x8x128xf32>,
    %c1 = arith.constant 1 : index
    %c0_11 = arith.constant 0 : index
    %c0_12 = arith.constant 0 : index
    %17 = vector.load %arg4[%c1, %c0_11, %c0_12] : memref<2x8x128xf32, #tpu.memory_space<vmem>>, vector<1x8x128xf32>
    %18 = vector.shape_cast %17 : vector<1x8x128xf32> to vector<8x128xf32>
    %19 = arith.addf %18, %10 : vector<8x128xf32>
    %c1_13 = arith.constant 1 : index
    %c0_14 = arith.constant 0 : index
    %c0_15 = arith.constant 0 : index
    %20 = vector.load %arg4[%c1_13, %c0_14, %c0_15] : memref<2x8x128xf32, #tpu.memory_space<vmem>>, vector<1x8x128xf32>
    %21 = vector.shape_cast %20 : vector<1x8x128xf32> to vector<8x128xf32>
    %22 = vector.shape_cast %19 : vector<8x128xf32> to vector<1x8x128xf32>
    tpu.vector_store %arg4[%c1_13, %c0_14, %c0_15], %22 {strides = array<i32>} : memref<2x8x128xf32, #tpu.memory_space<vmem>>, vector<1x8x128xf32>,
    return
  }
  func.func @transform_0(%arg0: i32, %arg1: i32) -> (i32, i32) {
    %c1_i32 = arith.constant 1 : i32
    %0 = arith.muli %arg0, %c1_i32 : i32
    %1 = arith.addi %0, %arg1 : i32
    %c0_i32 = arith.constant 0 : i32
    %c0_i32_0 = arith.constant 0 : i32
    return %1, %c0_i32 : i32, i32
  }
  func.func @transform_1(%arg0: i32, %arg1: i32) -> (i32, i32) {
    %c1_i32 = arith.constant 1 : i32
    %0 = arith.muli %arg0, %c1_i32 : i32
    %1 = arith.addi %0, %arg1 : i32
    %c0_i32 = arith.constant 0 : i32
    %c0_i32_0 = arith.constant 0 : i32
    return %1, %c0_i32 : i32, i32
  }
  func.func @transform_2(%arg0: i32, %arg1: i32) -> (i32, i32, i32) {
    %c0_i32 = arith.constant 0 : i32
    %c0_i32_0 = arith.constant 0 : i32
    %c0_i32_1 = arith.constant 0 : i32
    return %arg0, %c0_i32, %c0_i32_0 : i32, i32, i32
  }
}

</mosaic_0001>

<llo_original>
// kernel: tpu_custom_call.1
$region0: #{tpu_custom_call.1}
  #allocation0 [shape = 'u32[]', space=smem, size = 0x4, offset = 0x4, fixed_abs, tag = 'smem constant byte address 0x4 - core index']
  #allocation1 [shape = 'u32[144,128]{1,0:T(1,128)}', space=vmem, size = 0x12000, scoped, tag = 'internal scratch']
  %s0 = inlined_call_operand.hbm [shape: f32[16,128], index: 0, kind: input, shape index: {}]
  %s1 = inlined_call_operand.hbm [shape: f32[16,128], index: 1, kind: input, shape index: {}]
  %s2 = inlined_call_operand.hbm [shape: f32[2,8,128], index: 2, kind: output, shape index: {}]
  %s3 = sld [smem:[#allocation0]]
  $region30: #{tpu_custom_call.1} parent=0
    _
  %s5 = ssub.s32 1, %s3
  %s6 = scalar_select 0, %s5, %s3
  $region1: #{tpu_custom_call.1} parent=0
    #allocation2 [shape = 'u8[8192]{0}', space=vmem, size = 0x2000, scoped, tag = 'input window, operand 0, single buffered']
    #allocation3 [shape = 's32[1]{0}', space=sflag, size = 0x4, scoped, tag = 'scoped memory for tpu_custom_call.1']
    #allocation4 [shape = 's32[1]{0}', space=sflag, size = 0x4, scoped, tag = 'scoped memory for tpu_custom_call.1']
    #allocation5 [shape = 'u8[8192]{0}', space=vmem, size = 0x2000, scoped, tag = 'input window, operand 1, single buffered']
    #allocation6 [shape = 's32[1]{0}', space=sflag, size = 0x4, scoped, tag = 'scoped memory for tpu_custom_call.1']
    #allocation7 [shape = 'u8[8192]{0}', space=vmem, size = 0x2000, scoped, tag = 'output window, operand 0, single buffered']
    %7 = vsyncpa [#allocation3], 0
    %8 = vsyncpa [#allocation6], 0
    %9 = vsyncpa [#allocation4], 0
    // Predicated region
    $region2: #{tpu_custom_call.1} parent=1 // pred_check
      _
    $region3: #{tpu_custom_call.1} parent=1 // pred_check_branch
      %11 = sbr.rel (0) target = $region5
    $region4: #{tpu_custom_call.1} parent=1 // pred_region
      %s12 = sadd.s32 0, 0
      %s13 = smul.u32 2, %s12
      %s15 = ssub.s32 256, 256
      %16 = vsyncadd [#allocation3], %s15
      %s17 = smul.addr %s13, 128
      %s18 = scalar_lea.hbm %s0, %s17
      %s19 = sshll.u32 [#allocation2], 4
      %s20 = int_to_ptr.vmem [resolvable:$true] %s19
      %25 = dma.hbm_to_vmem [thread:$0]  %s18, 256, %s20, [#allocation3], 128, 128, 8
    $region5: #{tpu_custom_call.1} parent=1 // pred_fallthru
      _
    // Predicated region
    $region6: #{tpu_custom_call.1} parent=1 // pred_check
      _
    $region7: #{tpu_custom_call.1} parent=1 // pred_check_branch
      %27 = sbr.rel (0) target = $region9
    $region8: #{tpu_custom_call.1} parent=1 // pred_region
      %s28 = sadd.s32 0, 0
      %s29 = smul.u32 2, %s28
      %s31 = ssub.s32 256, 256
      %32 = vsyncadd [#allocation6], %s31
      %s33 = smul.addr %s29, 128
      %s34 = scalar_lea.hbm %s1, %s33
      %s35 = sshll.u32 [#allocation5], 4
      %s36 = int_to_ptr.vmem [resolvable:$true] %s35
      %41 = dma.hbm_to_vmem [thread:$0]  %s34, 256, %s36, [#allocation6], 128, 128, 8
    $region9: #{tpu_custom_call.1} parent=1 // pred_fallthru
      _
    // Predicated region
    $region10: #{tpu_custom_call.1} parent=1 // pred_check
      _
    $region11: #{tpu_custom_call.1} parent=1 // pred_check_branch
      %43 = sbr.rel (0) target = $region13
    $region12: #{tpu_custom_call.1} parent=1 // pred_region
      %44 = dma.done [#allocation3], 256
    $region13: #{tpu_custom_call.1} parent=1 // pred_fallthru
      _
    // Predicated region
    $region14: #{tpu_custom_call.1} parent=1 // pred_check
      _
    $region15: #{tpu_custom_call.1} parent=1 // pred_check_branch
      %46 = sbr.rel (0) target = $region17
    $region16: #{tpu_custom_call.1} parent=1 // pred_region
      %47 = dma.done [#allocation6], 256
    $region17: #{tpu_custom_call.1} parent=1 // pred_fallthru
      _
    %s48 = sadd.s32 0, 0
    %s49 = smul.u32 2, %s48
    %s50 = sadd.s32 0, 0
    %s51 = smul.u32 2, %s50
    %p52 = scmp.eq.s32.totalorder 0, 0
    // Predicated region
    $region18: #{tpu_custom_call.1} parent=1 // pred_check
      %p53 = pneg %p52
    $region19: #{tpu_custom_call.1} parent=1 // pred_check_branch
      %55 = sbr.rel (%p53) target = $region21
    $region20: #{tpu_custom_call.1} parent=1 // pred_region
      %56 = vst [vmem:[#allocation7] sm:$0xff] 0.0
      %57 = vst [vmem:[#allocation7 + $0x8] sm:$0xff] 0.0
    $region21: #{tpu_custom_call.1} parent=1 // pred_fallthru
      _
    %v58 = vld [vmem:[#allocation2] sm:$0xff]
    %v59 = vld [vmem:[#allocation2 + $0x8] sm:$0xff]
    %v60 = vld [vmem:[#allocation5] sm:$0xff]
    %v61 = vld [vmem:[#allocation5 + $0x8] sm:$0xff]
    %v62 = vmul.f32 %v58, %v60
    %v63 = vmul.f32 %v59, %v61
    %v64 = vadd.f32 %v62, %v63
    %v65 = vadd.f32 %v58, %v60
    %v66 = vadd.f32 %v59, %v61
    %v67 = vadd.f32 %v65, %v66
    %v68 = vld [vmem:[#allocation7] sm:$0xff]
    %v69 = vadd.f32 %v68, %v64
    %70 = vst [vmem:[#allocation7] sm:$0xff] %v69
    %s71 = scalar_lea.vmem [#allocation7], 8
    %v72 = vld [vmem:[%s71] sm:$0xff]
    %v73 = vadd.f32 %v72, %v67
    %74 = vst [vmem:[%s71] sm:$0xff] %v73
    // Predicated region
    $region22: #{tpu_custom_call.1} parent=1 // pred_check
      _
    $region23: #{tpu_custom_call.1} parent=1 // pred_check_branch
      %76 = sbr.rel (0) target = $region25
    $region24: #{tpu_custom_call.1} parent=1 // pred_region
      %s78 = ssub.s32 256, 256
      %79 = vsyncadd [#allocation4], %s78
      %s80 = sshll.u32 [#allocation7], 4
      %s81 = int_to_ptr.vmem [resolvable:$true] %s80
      %86 = dma.vmem_to_hbm [thread:$0]  %s81, 256, %s2, [#allocation4], 128, 128, 8
    $region25: #{tpu_custom_call.1} parent=1 // pred_fallthru
      _
    // Predicated region
    $region26: #{tpu_custom_call.1} parent=1 // pred_check
      _
    $region27: #{tpu_custom_call.1} parent=1 // pred_check_branch
      %88 = sbr.rel (0) target = $region29
    $region28: #{tpu_custom_call.1} parent=1 // pred_region
      %89 = dma.done [#allocation4], 256
    $region29: #{tpu_custom_call.1} parent=1 // pred_fallthru
      _
    %90 = vsyncpa [#allocation3], 1
    %91 = vsyncpa [#allocation6], 1
    %92 = vsyncpa [#allocation4], 1

</llo_original>
